<compile_context>
chip_gen: v7x
topology: tpu7x:2x2x1
jax: 0.10.0
libtpu: 0.0.40
codegen_flags: <defaults>
</compile_context>

<pallas_src>
import functools

import jax
import jax.numpy as jnp
from jax.experimental import pallas as pl
from jax.experimental.pallas import tpu as pltpu


def _round_up(x, m):
    return (x + m - 1) // m * m


# ----------------------------- Pallas kernels ------------------------------

def _mm_bias_kernel(a_ref, w_ref, b_ref, o_ref, *, relu):
    r = jnp.dot(a_ref[...], w_ref[...],
                preferred_element_type=jnp.float32) + b_ref[...]
    if relu:
        r = jnp.maximum(r, 0.0)
    o_ref[...] = r


def _mm_bias_res_relu_kernel(a_ref, w_ref, b_ref, res_ref, o_ref):
    r = jnp.dot(a_ref[...], w_ref[...],
                preferred_element_type=jnp.float32) + b_ref[...] + res_ref[...]
    o_ref[...] = jnp.maximum(r, 0.0)


def pallas_matmul_bias(a, w_p, b_p, n_out, relu=False, residual=None):
    """out = relu?(a @ w + b [+ residual]).

    a:        (M, K)   activations (any float dtype, cast to bf16).
    w_p:      (Kp, Np) bf16 weights, pre-padded at init (Kp, Np mult. of 128).
    b_p:      (1, Np)  f32 bias, pre-padded at init.
    residual: optional (M, n_out) f32 tensor fused into the epilogue (+ReLU).
    Returns (M, n_out) f32.
    """
    M, K = a.shape
    Kp, Np = w_p.shape
    Mp = _round_up(max(M, 16), 16)          # bf16 sublane packing = 16
    tn = 256 if (Np % 256 == 0 and Np >= 512) else 128

    a16 = a.astype(jnp.bfloat16)
    if (M, K) != (Mp, Kp):
        a16 = jnp.pad(a16, ((0, Mp - M), (0, Kp - K)))

    in_specs = [
        pl.BlockSpec((Mp, Kp), lambda n: (0, 0)),   # A resident across n tiles
        pl.BlockSpec((Kp, tn), lambda n: (0, n)),   # stream weight column tile
        pl.BlockSpec((1, tn), lambda n: (0, n)),    # bias tile
    ]
    args = [a16, w_p, b_p]

    if residual is not None:
        res = residual.astype(jnp.float32)
        rM, rN = res.shape
        if (rM, rN) != (Mp, Np):
            res = jnp.pad(res, ((0, Mp - rM), (0, Np - rN)))
        in_specs.append(pl.BlockSpec((Mp, tn), lambda n: (0, n)))
        args.append(res)
        kernel = _mm_bias_res_relu_kernel
    else:
        kernel = functools.partial(_mm_bias_kernel, relu=relu)

    out = pl.pallas_call(
        kernel,
        out_shape=jax.ShapeDtypeStruct((Mp, Np), jnp.float32),
        grid_spec=pltpu.PrefetchScalarGridSpec(
            num_scalar_prefetch=0,
            grid=(Np // tn,),
            in_specs=in_specs,
            out_specs=pl.BlockSpec((Mp, tn), lambda n: (0, n)),
        ),
        compiler_params=pltpu.CompilerParams(
            dimension_semantics=("parallel",)),
    )(*args)
    return out[:M, :n_out]


def _max_reduce_kernel(x_ref, o_ref):
    o_ref[...] = jnp.max(x_ref[...], axis=0)


def _mean_reduce_kernel(x_ref, o_ref):
    o_ref[...] = jnp.mean(x_ref[...], axis=1)


# ----------------------------- JAX glue (layout) ---------------------------

def _extract_patches(x, k, stride, pad):
    """im2col for NHWC -> (N*Ho*Wo, k*k*C) with (kh, kw, cin) ordering."""
    N, H, W, C = x.shape
    Ho = (H + 2 * pad - k) // stride + 1
    Wo = (W + 2 * pad - k) // stride + 1
    if pad:
        x = jnp.pad(x, ((0, 0), (pad, pad), (pad, pad), (0, 0)))
    if k == 1 and stride == 1:
        return x.reshape(N * Ho * Wo, C), Ho, Wo
    cols = []
    for i in range(k):
        for j in range(k):
            cols.append(x[:, i:i + stride * (Ho - 1) + 1:stride,
                             j:j + stride * (Wo - 1) + 1:stride, :])
    patches = jnp.concatenate(cols, axis=-1)
    return patches.reshape(N * Ho * Wo, k * k * C), Ho, Wo


def conv_bn(x, unit, relu, residual=None):
    """conv (bias folded from BN) + optional ReLU / fused residual."""
    patches, Ho, Wo = _extract_patches(x, unit['k'], unit['stride'], unit['pad'])
    out = pallas_matmul_bias(patches, unit['w'], unit['b'], unit['cout'],
                             relu=relu, residual=residual)
    return out.reshape(x.shape[0], Ho, Wo, unit['cout'])


def maxpool_3x3_s2_p1(x):
    N, H, W, C = x.shape
    Ho = (H + 2 - 3) // 2 + 1
    Wo = (W + 2 - 3) // 2 + 1
    xp = jnp.pad(x, ((0, 0), (1, 1), (1, 1), (0, 0)),
                 constant_values=-jnp.inf)
    views = []
    for i in range(3):
        for j in range(3):
            views.append(xp[:, i:i + 2 * (Ho - 1) + 1:2,
                              j:j + 2 * (Wo - 1) + 1:2, :])
    stacked = jnp.stack(views, axis=0).reshape(9, N * Ho * Wo, C)
    out = pl.pallas_call(
        _max_reduce_kernel,
        out_shape=jax.ShapeDtypeStruct((N * Ho * Wo, C), x.dtype),
    )(stacked)
    return out.reshape(N, Ho, Wo, C)


def global_avg_pool(x):
    N, H, W, C = x.shape
    return pl.pallas_call(
        _mean_reduce_kernel,
        out_shape=jax.ShapeDtypeStruct((N, C), x.dtype),
    )(x.reshape(N, H * W, C))


# ----------------------------- parameters ----------------------------------

def _pad_wb(w_mat, b_vec):
    """Pad weights/bias to 128-aligned (Kp, Np) once at init; weights bf16."""
    K, N = w_mat.shape
    Kp, Np = _round_up(K, 128), _round_up(N, 128)
    w_p = jnp.zeros((Kp, Np), jnp.bfloat16).at[:K, :N].set(
        w_mat.astype(jnp.bfloat16))
    b_p = jnp.zeros((1, Np), jnp.float32).at[0, :N].set(b_vec)
    return w_p, b_p


def _init_conv_bn(key, cin, cout, k, stride, pad):
    kw, kg, kb, km, kv = jax.random.split(key, 5)
    w = jax.random.normal(kw, (cout, cin, k, k), jnp.float32)
    w = w * (0.1 / (k * k * cin) ** 0.5)
    gamma = 1.0 + 0.05 * jax.random.normal(kg, (cout,), jnp.float32)
    beta = 0.05 * jax.random.normal(kb, (cout,), jnp.float32)
    mean = 0.05 * jax.random.normal(km, (cout,), jnp.float32)
    var = 1.0 + 0.05 * jnp.abs(jax.random.normal(kv, (cout,), jnp.float32))
    scale = gamma / jnp.sqrt(var + 1e-5)          # exact inference BN fold
    w_f = w * scale[:, None, None, None]
    b_f = beta - mean * scale
    w_mat = jnp.transpose(w_f, (2, 3, 1, 0)).reshape(k * k * cin, cout)
    w_p, b_p = _pad_wb(w_mat, b_f)
    return {'w': w_p, 'b': b_p, 'k': k, 'stride': stride, 'pad': pad,
            'cout': cout}


def _init_bottleneck(key, cin, width, stride):
    k1, k2, k3, k4 = jax.random.split(key, 4)
    blk = {
        'conv1': _init_conv_bn(k1, cin, width, 1, 1, 0),
        'conv2': _init_conv_bn(k2, width, width, 3, stride, 1),
        'conv3': _init_conv_bn(k3, width, width * 4, 1, 1, 0),
    }
    if stride != 1 or cin != width * 4:
        blk['down'] = _init_conv_bn(k4, cin, width * 4, 1, stride, 0)
    return blk


def init_params(key):
    keys = jax.random.split(key, 6)
    params = {'conv1': _init_conv_bn(keys[0], 3, 64, 7, 2, 3)}
    cfgs = [('layer1', 3, 64, 1), ('layer2', 4, 128, 2),
            ('layer3', 6, 256, 2), ('layer4', 3, 512, 2)]
    cin = 64
    for idx, (name, nblocks, width, stride) in enumerate(cfgs):
        lkeys = jax.random.split(keys[1 + idx], nblocks)
        blocks = []
        for b in range(nblocks):
            s = stride if b == 0 else 1
            blocks.append(_init_bottleneck(lkeys[b], cin, width, s))
            cin = width * 4
        params[name] = blocks
    kfc1w, kfc1b, kfc2w, kfc2b = jax.random.split(keys[5], 4)
    fc1w = jax.random.normal(kfc1w, (2048, 32), jnp.float32) / 2048 ** 0.5
    fc1b = 0.01 * jax.random.normal(kfc1b, (32,), jnp.float32)
    fc2w = jax.random.normal(kfc2w, (32, 10), jnp.float32) / 32 ** 0.5
    fc2b = 0.01 * jax.random.normal(kfc2b, (10,), jnp.float32)
    w1p, b1p = _pad_wb(fc1w, fc1b)
    w2p, b2p = _pad_wb(fc2w, fc2b)
    params['fc1'] = {'w': w1p, 'b': b1p, 'cout': 32}
    params['fc2'] = {'w': w2p, 'b': b2p, 'cout': 10}
    return params


# ----------------------------- forward pass --------------------------------

def bottleneck_forward(x, blk):
    out = conv_bn(x, blk['conv1'], relu=True)
    out = conv_bn(out, blk['conv2'], relu=True)
    identity = conv_bn(x, blk['down'], relu=False) if 'down' in blk else x
    N, H, W, _ = out.shape
    # conv3 (1x1) with residual add + ReLU fused into the matmul epilogue.
    res2d = identity.reshape(N * H * W, blk['conv3']['cout'])
    return conv_bn(out, blk['conv3'], relu=True, residual=res2d)


def resnet50_cifar_forward(params, img_nchw):
    x = jnp.transpose(img_nchw.astype(jnp.float32), (0, 2, 3, 1))  # NCHW->NHWC
    x = conv_bn(x, params['conv1'], relu=True)          # 7x7/2 + BN + ReLU
    x = maxpool_3x3_s2_p1(x)                            # 3x3/2 maxpool
    for name in ('layer1', 'layer2', 'layer3', 'layer4'):
        for blk in params[name]:
            x = bottleneck_forward(x, blk)
    feat = global_avg_pool(x)                           # (N, 2048) == view(N, -1)
    h = pallas_matmul_bias(feat, params['fc1']['w'], params['fc1']['b'],
                           params['fc1']['cout'])       # fc1
    # TODO(synk): nn.Dropout(p=0.5) is identity in eval mode; training-mode
    # stochastic masking would use pltpu.prng_seed / pltpu.prng_random_bits.
    logits = pallas_matmul_bias(h, params['fc2']['w'], params['fc2']['b'],
                                params['fc2']['cout'])  # fc2
    return logits


if __name__ == "__main__":
    key = jax.random.PRNGKey(0)
    pkey, xkey = jax.random.split(key)
    params = init_params(pkey)
    # CIFAR-sized NCHW input (smallest spatial that survives the 5 stride-2
    # stages of ResNet50 down to 1x1 before the adaptive average pool).
    img = jax.random.normal(xkey, (2, 3, 32, 32), jnp.float32)
    out = resnet50_cifar_forward(params, img)
    jax.block_until_ready(out)
    assert out.shape == (2, 10) and out.dtype == jnp.float32
    print("KERNEL_OK")
</pallas_src>

<mosaic_0001>
module attributes {stable_mosaic.version = 11 : i64} {
  func.func @_mm_bias_kernel(%arg0: i32, %arg1: memref<512x256xbf16, #tpu.memory_space<vmem>>, %arg2: memref<256x128xbf16, #tpu.memory_space<vmem>>, %arg3: memref<1x128xf32, #tpu.memory_space<vmem>>, %arg4: memref<512x128xf32, #tpu.memory_space<vmem>>) attributes {dimension_semantics = [#tpu.dimension_semantics<parallel>], iteration_bounds = array<i64: 1>, scalar_prefetch = 0 : i64, scratch_operands = 0 : i64, tpu.core_type = #tpu.core_type<tc>, window_params = [{pipeline_mode = #tpu.pipeline_mode<synchronous>, transform_indices = @transform_0, window_bounds = array<i64: 512, 256>}, {transform_indices = @transform_1, window_bounds = array<i64: 256, 128>}, {transform_indices = @transform_2, window_bounds = array<i64: 1, 128>}, {transform_indices = @transform_3, window_bounds = array<i64: 512, 128>}]} {
    %c0 = arith.constant 0 : index
    %c0_0 = arith.constant 0 : index
    %0 = vector.load %arg1[%c0, %c0_0] : memref<512x256xbf16, #tpu.memory_space<vmem>>, vector<512x256xbf16>
    %c0_1 = arith.constant 0 : index
    %c0_2 = arith.constant 0 : index
    %1 = vector.load %arg2[%c0_1, %c0_2] : memref<256x128xbf16, #tpu.memory_space<vmem>>, vector<256x128xbf16>
    %cst = arith.constant dense<0.000000e+00> : vector<512x128xf32>
    %2 = tpu.matmul %0, %1, %cst {dimension_numbers = #tpu.dot_dimension_numbers<[1], [0], [0], [1], [0, 0, 1, 1], [], []>} : vector<512x256xbf16>, vector<256x128xbf16>, vector<512x128xf32> -> vector<512x128xf32>
    %c0_3 = arith.constant 0 : index
    %c0_4 = arith.constant 0 : index
    %3 = vector.load %arg3[%c0_3, %c0_4] : memref<1x128xf32, #tpu.memory_space<vmem>>, vector<1x128xf32>
    %4 = vector.broadcast %3 : vector<1x128xf32> to vector<512x128xf32>
    %5 = arith.addf %2, %4 : vector<512x128xf32>
    %cst_5 = arith.constant 0.000000e+00 : f32
    %6 = vector.broadcast %cst_5 : f32 to vector<512x128xf32>
    %7 = arith.maximumf %5, %6 : vector<512x128xf32>
    %c0_6 = arith.constant 0 : index
    %c0_7 = arith.constant 0 : index
    %8 = vector.load %arg4[%c0_6, %c0_7] : memref<512x128xf32, #tpu.memory_space<vmem>>, vector<512x128xf32>
    tpu.vector_store %arg4[%c0_6, %c0_7], %7 {strides = array<i32>} : memref<512x128xf32, #tpu.memory_space<vmem>>, vector<512x128xf32>,
    return
  }
  func.func @transform_0(%arg0: i32) -> (i32, i32) {
    %c0_i32 = arith.constant 0 : i32
    %c0_i32_0 = arith.constant 0 : i32
    %c0_i32_1 = arith.constant 0 : i32
    return %c0_i32, %c0_i32_0 : i32, i32
  }
  func.func @transform_1(%arg0: i32) -> (i32, i32) {
    %c0_i32 = arith.constant 0 : i32
    %c0_i32_0 = arith.constant 0 : i32
    return %c0_i32, %arg0 : i32, i32
  }
  func.func @transform_2(%arg0: i32) -> (i32, i32) {
    %c0_i32 = arith.constant 0 : i32
    %c0_i32_0 = arith.constant 0 : i32
    return %c0_i32, %arg0 : i32, i32
  }
  func.func @transform_3(%arg0: i32) -> (i32, i32) {
    %c0_i32 = arith.constant 0 : i32
    %c0_i32_0 = arith.constant 0 : i32
    return %c0_i32, %arg0 : i32, i32
  }
}

</mosaic_0001>

<llo_original>
// kernel: tpu_custom_call.1
$region0: #{tpu_custom_call.1}
  #allocation0 [shape = 'u32[]', space=smem, size = 0x4, offset = 0x4, fixed_abs, tag = 'smem constant byte address 0x4 - core index']
  #allocation1 [shape = 'u32[144,128]{1,0:T(1,128)}', space=vmem, size = 0x12000, scoped, tag = 'internal scratch']
  %s0 = inlined_call_operand.hbm [shape: bf16[512,256], index: 0, kind: input, shape index: {}]
  %s1 = inlined_call_operand.hbm [shape: bf16[256,128], index: 1, kind: input, shape index: {}]
  %s2 = inlined_call_operand.vmem [shape: f32[1,128], index: 2, kind: input, shape index: {}]
  %s3 = inlined_call_operand.hbm [shape: f32[512,128], index: 3, kind: output, shape index: {}]
  %s4 = sld [smem:[#allocation0]]
  $region30: #{tpu_custom_call.1} parent=0
    _
  %s6 = ssub.s32 1, %s4
  %s7 = scalar_select 0, %s6, %s4
  $region1: #{tpu_custom_call.1} parent=0
    #allocation2 [shape = 'u8[262144]{0}', space=vmem, size = 0x40000, scoped, tag = 'input window, operand 0, single buffered']
    #allocation3 [shape = 's32[1]{0}', space=sflag, size = 0x4, scoped, tag = 'scoped memory for tpu_custom_call.1']
    #allocation4 [shape = 's32[1]{0}', space=sflag, size = 0x4, scoped, tag = 'scoped memory for tpu_custom_call.1']
    #allocation5 [shape = 'u8[65536]{0}', space=vmem, size = 0x10000, scoped, tag = 'input window, operand 1, single buffered']
    #allocation6 [shape = 's32[1]{0}', space=sflag, size = 0x4, scoped, tag = 'scoped memory for tpu_custom_call.1']
    #allocation7 [shape = 'u8[262144]{0}', space=vmem, size = 0x40000, scoped, tag = 'output window, operand 0, single buffered']
    %8 = vsyncpa [#allocation3], 0
    %9 = vsyncpa [#allocation6], 0
    %10 = vsyncpa [#allocation4], 0
    // Predicated region
    $region2: #{tpu_custom_call.1} parent=1 // pred_check
      _
    $region3: #{tpu_custom_call.1} parent=1 // pred_check_branch
      %12 = sbr.rel (0) target = $region5
    $region4: #{tpu_custom_call.1} parent=1 // pred_region
      %s14 = ssub.s32 8192, 8192
      %15 = vsyncadd [#allocation3], %s14
      %s16 = sshll.u32 [#allocation2], 4
      %s17 = int_to_ptr.vmem [resolvable:$true] %s16
      %22 = dma.hbm_to_vmem [thread:$0]  %s0, 8192, %s17, [#allocation3], 128, 128, 8
    $region5: #{tpu_custom_call.1} parent=1 // pred_fallthru
      _
    // Predicated region
    $region6: #{tpu_custom_call.1} parent=1 // pred_check
      _
    $region7: #{tpu_custom_call.1} parent=1 // pred_check_branch
      %24 = sbr.rel (0) target = $region9
    $region8: #{tpu_custom_call.1} parent=1 // pred_region
      %s26 = ssub.s32 2048, 2048
      %27 = vsyncadd [#allocation6], %s26
      %s28 = sshll.u32 [#allocation5], 4
      %s29 = int_to_ptr.vmem [resolvable:$true] %s28
      %34 = dma.hbm_to_vmem [thread:$0]  %s1, 2048, %s29, [#allocation6], 64, 64, 4
    $region9: #{tpu_custom_call.1} parent=1 // pred_fallthru
      _
    // Predicated region
    $region10: #{tpu_custom_call.1} parent=1 // pred_check
      _
    $region11: #{tpu_custom_call.1} parent=1 // pred_check_branch
      %36 = sbr.rel (0) target = $region13
    $region12: #{tpu_custom_call.1} parent=1 // pred_region
      _
    $region13: #{tpu_custom_call.1} parent=1 // pred_fallthru
      _
    // Predicated region
    $region14: #{tpu_custom_call.1} parent=1 // pred_check
      _
    $region15: #{tpu_custom_call.1} parent=1 // pred_check_branch
      %38 = sbr.rel (0) target = $region17
    $region16: #{tpu_custom_call.1} parent=1 // pred_region
      %39 = dma.done [#allocation3], 8192
    $region17: #{tpu_custom_call.1} parent=1 // pred_fallthru
      _
    // Predicated region
    $region18: #{tpu_custom_call.1} parent=1 // pred_check
      _
    $region19: #{tpu_custom_call.1} parent=1 // pred_check_branch
      %41 = sbr.rel (0) target = $region21
    $region20: #{tpu_custom_call.1} parent=1 // pred_region
      %42 = dma.done [#allocation6], 2048
    $region21: #{tpu_custom_call.1} parent=1 // pred_fallthru
      _
    %v44 = vld [vmem:[#allocation2] sm:$0xff]
    %v45 = vld [vmem:[#allocation2 + $0x8] sm:$0xff]
    %v46 = vld [vmem:[#allocation2 + $0x10] sm:$0xff]
    %v47 = vld [vmem:[#allocation2 + $0x18] sm:$0xff]
    %v48 = vld [vmem:[#allocation2 + $0x20] sm:$0xff]
    %v49 = vld [vmem:[#allocation2 + $0x28] sm:$0xff]
    %v50 = vld [vmem:[#allocation2 + $0x30] sm:$0xff]
    %v51 = vld [vmem:[#allocation2 + $0x38] sm:$0xff]
    %v52 = vld [vmem:[#allocation2 + $0x40] sm:$0xff]
    %v53 = vld [vmem:[#allocation2 + $0x48] sm:$0xff]
    %v54 = vld [vmem:[#allocation2 + $0x50] sm:$0xff]
    %v55 = vld [vmem:[#allocation2 + $0x58] sm:$0xff]
    %v56 = vld [vmem:[#allocation2 + $0x60] sm:$0xff]
    %v57 = vld [vmem:[#allocation2 + $0x68] sm:$0xff]
    %v58 = vld [vmem:[#allocation2 + $0x70] sm:$0xff]
    %v59 = vld [vmem:[#allocation2 + $0x78] sm:$0xff]
    %v60 = vld [vmem:[#allocation2 + $0x80] sm:$0xff]
    %v61 = vld [vmem:[#allocation2 + $0x88] sm:$0xff]
    %v62 = vld [vmem:[#allocation2 + $0x90] sm:$0xff]
    %v63 = vld [vmem:[#allocation2 + $0x98] sm:$0xff]
    %v64 = vld [vmem:[#allocation2 + $0xa0] sm:$0xff]
    %v65 = vld [vmem:[#allocation2 + $0xa8] sm:$0xff]
    %v66 = vld [vmem:[#allocation2 + $0xb0] sm:$0xff]
    %v67 = vld [vmem:[#allocation2 + $0xb8] sm:$0xff]
    %v68 = vld [vmem:[#allocation2 + $0xc0] sm:$0xff]
    %v69 = vld [vmem:[#allocation2 + $0xc8] sm:$0xff]
    %v70 = vld [vmem:[#allocation2 + $0xd0] sm:$0xff]
    %v71 = vld [vmem:[#allocation2 + $0xd8] sm:$0xff]
    %v72 = vld [vmem:[#allocation2 + $0xe0] sm:$0xff]
    %v73 = vld [vmem:[#allocation2 + $0xe8] sm:$0xff]
    %v74 = vld [vmem:[#allocation2 + $0xf0] sm:$0xff]
    %v75 = vld [vmem:[#allocation2 + $0xf8] sm:$0xff]
    %v76 = vld [vmem:[#allocation2 + $0x100] sm:$0xff]
    %v77 = vld [vmem:[#allocation2 + $0x108] sm:$0xff]
    %v78 = vld [vmem:[#allocation2 + $0x110] sm:$0xff]
    %v79 = vld [vmem:[#allocation2 + $0x118] sm:$0xff]
    %v80 = vld [vmem:[#allocation2 + $0x120] sm:$0xff]
    %v81 = vld [vmem:[#allocation2 + $0x128] sm:$0xff]
    %v82 = vld [vmem:[#allocation2 + $0x130] sm:$0xff]
    %v83 = vld [vmem:[#allocation2 + $0x138] sm:$0xff]
    %v84 = vld [vmem:[#allocation2 + $0x140] sm:$0xff]
    %v85 = vld [vmem:[#allocation2 + $0x148] sm:$0xff]
    %v86 = vld [vmem:[#allocation2 + $0x150] sm:$0xff]
    %v87 = vld [vmem:[#allocation2 + $0x158] sm:$0xff]
    %v88 = vld [vmem:[#allocation2 + $0x160] sm:$0xff]
    %v89 = vld [vmem:[#allocation2 + $0x168] sm:$0xff]
    %v90 = vld [vmem:[#allocation2 + $0x170] sm:$0xff]
    %v91 = vld [vmem:[#allocation2 + $0x178] sm:$0xff]
    %v92 = vld [vmem:[#allocation2 + $0x180] sm:$0xff]
    %v93 = vld [vmem:[#allocation2 + $0x188] sm:$0xff]
    %v94 = vld [vmem:[#allocation2 + $0x190] sm:$0xff]
    %v95 = vld [vmem:[#allocation2 + $0x198] sm:$0xff]
    %v96 = vld [vmem:[#allocation2 + $0x1a0] sm:$0xff]
    %v97 = vld [vmem:[#allocation2 + $0x1a8] sm:$0xff]
    %v98 = vld [vmem:[#allocation2 + $0x1b0] sm:$0xff]
    %v99 = vld [vmem:[#allocation2 + $0x1b8] sm:$0xff]
    %v100 = vld [vmem:[#allocation2 + $0x1c0] sm:$0xff]
    %v101 = vld [vmem:[#allocation2 + $0x1c8] sm:$0xff]
    %v102 = vld [vmem:[#allocation2 + $0x1d0] sm:$0xff]
    %v103 = vld [vmem:[#allocation2 + $0x1d8] sm:$0xff]
    %v104 = vld [vmem:[#allocation2 + $0x1e0] sm:$0xff]
    %v105 = vld [vmem:[#allocation2 + $0x1e8] sm:$0xff]
    %v106 = vld [vmem:[#allocation2 + $0x1f0] sm:$0xff]
    %v107 = vld [vmem:[#allocation2 + $0x1f8] sm:$0xff]
    %v108 = vld [vmem:[#allocation5] sm:$0xf]
    %v109 = vld [vmem:[#allocation5 + $0x4] sm:$0xf]
    %v110 = vld [vmem:[#allocation5 + $0x8] sm:$0xf]
    %v111 = vld [vmem:[#allocation5 + $0xc] sm:$0xf]
    %v112 = vld [vmem:[#allocation5 + $0x10] sm:$0xf]
    %v113 = vld [vmem:[#allocation5 + $0x14] sm:$0xf]
    %v114 = vld [vmem:[#allocation5 + $0x18] sm:$0xf]
    %v115 = vld [vmem:[#allocation5 + $0x1c] sm:$0xf]
    %v116 = vld [vmem:[#allocation5 + $0x20] sm:$0xf]
    %v117 = vld [vmem:[#allocation5 + $0x24] sm:$0xf]
    %v118 = vld [vmem:[#allocation5 + $0x28] sm:$0xf]
    %v119 = vld [vmem:[#allocation5 + $0x2c] sm:$0xf]
    %v120 = vld [vmem:[#allocation5 + $0x30] sm:$0xf]
    %v121 = vld [vmem:[#allocation5 + $0x34] sm:$0xf]
    %v122 = vld [vmem:[#allocation5 + $0x38] sm:$0xf]
    %v123 = vld [vmem:[#allocation5 + $0x3c] sm:$0xf]
    %v124 = vld [vmem:[#allocation5 + $0x40] sm:$0xf]
    %v125 = vld [vmem:[#allocation5 + $0x44] sm:$0xf]
    %v126 = vld [vmem:[#allocation5 + $0x48] sm:$0xf]
    %v127 = vld [vmem:[#allocation5 + $0x4c] sm:$0xf]
    %v128 = vld [vmem:[#allocation5 + $0x50] sm:$0xf]
    %v129 = vld [vmem:[#allocation5 + $0x54] sm:$0xf]
    %v130 = vld [vmem:[#allocation5 + $0x58] sm:$0xf]
    %v131 = vld [vmem:[#allocation5 + $0x5c] sm:$0xf]
    %v132 = vld [vmem:[#allocation5 + $0x60] sm:$0xf]
    %v133 = vld [vmem:[#allocation5 + $0x64] sm:$0xf]
    %v134 = vld [vmem:[#allocation5 + $0x68] sm:$0xf]
    %v135 = vld [vmem:[#allocation5 + $0x6c] sm:$0xf]
    %v136 = vld [vmem:[#allocation5 + $0x70] sm:$0xf]
    %v137 = vld [vmem:[#allocation5 + $0x74] sm:$0xf]
    %v138 = vld [vmem:[#allocation5 + $0x78] sm:$0xf]
    %v139 = vld [vmem:[#allocation5 + $0x7c] sm:$0xf]
    %v140 = vld [vmem:[%s2] sm:$0x1]
    %v142 = vlaneseq
    %v143 = vshrl.u32 %v142, 7
    %v144 = vsub.s32 0, %v143
    %v145 = vrot.slane %v140, %v144
    %v211 = vunpack.c.l.b16 %v44
    %v212 = vunpack.c.h.b16 %v44
    %v213 = vunpack.c.l.b16 %v45
    %v214 = vunpack.c.h.b16 %v45
    %v215 = vunpack.c.l.b16 %v46
    %v216 = vunpack.c.h.b16 %v46
    %v217 = vunpack.c.l.b16 %v47
    %v218 = vunpack.c.h.b16 %v47
    %v219 = vunpack.c.l.b16 %v48
    %v220 = vunpack.c.h.b16 %v48
    %v221 = vunpack.c.l.b16 %v49
    %v222 = vunpack.c.h.b16 %v49
    %v223 = vunpack.c.l.b16 %v50
    %v224 = vunpack.c.h.b16 %v50
    %v225 = vunpack.c.l.b16 %v51
    %v226 = vunpack.c.h.b16 %v51
    %v227 = vunpack.c.l.b16 %v52
    %v228 = vunpack.c.h.b16 %v52
    %v229 = vunpack.c.l.b16 %v53
    %v230 = vunpack.c.h.b16 %v53
    %v231 = vunpack.c.l.b16 %v54
    %v232 = vunpack.c.h.b16 %v54
    %v233 = vunpack.c.l.b16 %v55
    %v234 = vunpack.c.h.b16 %v55
    %v235 = vunpack.c.l.b16 %v56
    %v236 = vunpack.c.h.b16 %v56
    %v237 = vunpack.c.l.b16 %v57
    %v238 = vunpack.c.h.b16 %v57
    %v239 = vunpack.c.l.b16 %v58
    %v240 = vunpack.c.h.b16 %v58
    %v241 = vunpack.c.l.b16 %v59
    %v242 = vunpack.c.h.b16 %v59
    %v243 = vunpack.c.l.b16 %v60
    %v244 = vunpack.c.h.b16 %v60
    %v245 = vunpack.c.l.b16 %v61
    %v246 = vunpack.c.h.b16 %v61
    %v247 = vunpack.c.l.b16 %v62
    %v248 = vunpack.c.h.b16 %v62
    %v249 = vunpack.c.l.b16 %v63
    %v250 = vunpack.c.h.b16 %v63
    %v251 = vunpack.c.l.b16 %v64
    %v252 = vunpack.c.h.b16 %v64
    %v253 = vunpack.c.l.b16 %v65
    %v254 = vunpack.c.h.b16 %v65
    %v255 = vunpack.c.l.b16 %v66
    %v256 = vunpack.c.h.b16 %v66
    %v257 = vunpack.c.l.b16 %v67
    %v258 = vunpack.c.h.b16 %v67
    %v259 = vunpack.c.l.b16 %v68
    %v260 = vunpack.c.h.b16 %v68
    %v261 = vunpack.c.l.b16 %v69
    %v262 = vunpack.c.h.b16 %v69
    %v263 = vunpack.c.l.b16 %v70
    %v264 = vunpack.c.h.b16 %v70
    %v265 = vunpack.c.l.b16 %v71
    %v266 = vunpack.c.h.b16 %v71
    %v267 = vunpack.c.l.b16 %v72
    %v268 = vunpack.c.h.b16 %v72
    %v269 = vunpack.c.l.b16 %v73
    %v270 = vunpack.c.h.b16 %v73
    %v271 = vunpack.c.l.b16 %v74
    %v272 = vunpack.c.h.b16 %v74
    %v273 = vunpack.c.l.b16 %v75
    %v274 = vunpack.c.h.b16 %v75
    %v275 = vunpack.c.l.b16 %v76
    %v276 = vunpack.c.h.b16 %v76
    %v277 = vunpack.c.l.b16 %v77
    %v278 = vunpack.c.h.b16 %v77
    %v279 = vunpack.c.l.b16 %v78
    %v280 = vunpack.c.h.b16 %v78
    %v281 = vunpack.c.l.b16 %v79
    %v282 = vunpack.c.h.b16 %v79
    %v283 = vunpack.c.l.b16 %v80
    %v284 = vunpack.c.h.b16 %v80
    %v285 = vunpack.c.l.b16 %v81
    %v286 = vunpack.c.h.b16 %v81
    %v287 = vunpack.c.l.b16 %v82
    %v288 = vunpack.c.h.b16 %v82
    %v289 = vunpack.c.l.b16 %v83
    %v290 = vunpack.c.h.b16 %v83
    %v291 = vunpack.c.l.b16 %v84
    %v292 = vunpack.c.h.b16 %v84
    %v293 = vunpack.c.l.b16 %v85
    %v294 = vunpack.c.h.b16 %v85
    %v295 = vunpack.c.l.b16 %v86
    %v296 = vunpack.c.h.b16 %v86
    %v297 = vunpack.c.l.b16 %v87
    %v298 = vunpack.c.h.b16 %v87
    %v299 = vunpack.c.l.b16 %v88
    %v300 = vunpack.c.h.b16 %v88
    %v301 = vunpack.c.l.b16 %v89
    %v302 = vunpack.c.h.b16 %v89
    %v303 = vunpack.c.l.b16 %v90
    %v304 = vunpack.c.h.b16 %v90
    %v305 = vunpack.c.l.b16 %v91
    %v306 = vunpack.c.h.b16 %v91
    %v307 = vunpack.c.l.b16 %v92
    %v308 = vunpack.c.h.b16 %v92
    %v309 = vunpack.c.l.b16 %v93
    %v310 = vunpack.c.h.b16 %v93
    %v311 = vunpack.c.l.b16 %v94
    %v312 = vunpack.c.h.b16 %v94
    %v313 = vunpack.c.l.b16 %v95
    %v314 = vunpack.c.h.b16 %v95
    %v315 = vunpack.c.l.b16 %v96
    %v316 = vunpack.c.h.b16 %v96
    %v317 = vunpack.c.l.b16 %v97
    %v318 = vunpack.c.h.b16 %v97
    %v319 = vunpack.c.l.b16 %v98
    %v320 = vunpack.c.h.b16 %v98
    %v321 = vunpack.c.l.b16 %v99
    %v322 = vunpack.c.h.b16 %v99
    %v323 = vunpack.c.l.b16 %v100
    %v324 = vunpack.c.h.b16 %v100
    %v325 = vunpack.c.l.b16 %v101
    %v326 = vunpack.c.h.b16 %v101
    %v327 = vunpack.c.l.b16 %v102
    %v328 = vunpack.c.h.b16 %v102
    %v329 = vunpack.c.l.b16 %v103
    %v330 = vunpack.c.h.b16 %v103
    %v331 = vunpack.c.l.b16 %v104
    %v332 = vunpack.c.h.b16 %v104
    %v333 = vunpack.c.l.b16 %v105
    %v334 = vunpack.c.h.b16 %v105
    %v335 = vunpack.c.l.b16 %v106
    %v336 = vunpack.c.h.b16 %v106
    %v337 = vunpack.c.l.b16 %v107
    %v338 = vunpack.c.h.b16 %v107
    %v339 = vpack.c.b16 %v213, %v211
    %v340 = vpack.c.b16 %v214, %v212
    %v341 = vpack.c.b16 %v217, %v215
    %v342 = vpack.c.b16 %v218, %v216
    %v343 = vpack.c.b16 %v221, %v219
    %v344 = vpack.c.b16 %v222, %v220
    %v345 = vpack.c.b16 %v225, %v223
    %v346 = vpack.c.b16 %v226, %v224
    %v347 = vpack.c.b16 %v229, %v227
    %v348 = vpack.c.b16 %v230, %v228
    %v349 = vpack.c.b16 %v233, %v231
    %v350 = vpack.c.b16 %v234, %v232
    %v351 = vpack.c.b16 %v237, %v235
    %v352 = vpack.c.b16 %v238, %v236
    %v353 = vpack.c.b16 %v241, %v239
    %v354 = vpack.c.b16 %v242, %v240
    %v355 = vpack.c.b16 %v245, %v243
    %v356 = vpack.c.b16 %v246, %v244
    %v357 = vpack.c.b16 %v249, %v247
    %v358 = vpack.c.b16 %v250, %v248
    %v359 = vpack.c.b16 %v253, %v251
    %v360 = vpack.c.b16 %v254, %v252
    %v361 = vpack.c.b16 %v257, %v255
    %v362 = vpack.c.b16 %v258, %v256
    %v363 = vpack.c.b16 %v261, %v259
    %v364 = vpack.c.b16 %v262, %v260
    %v365 = vpack.c.b16 %v265, %v263
    %v366 = vpack.c.b16 %v266, %v264
    %v367 = vpack.c.b16 %v269, %v267
    %v368 = vpack.c.b16 %v270, %v268
    %v369 = vpack.c.b16 %v273, %v271
    %v370 = vpack.c.b16 %v274, %v272
    %v371 = vpack.c.b16 %v277, %v275
    %v372 = vpack.c.b16 %v278, %v276
    %v373 = vpack.c.b16 %v281, %v279
    %v374 = vpack.c.b16 %v282, %v280
    %v375 = vpack.c.b16 %v285, %v283
    %v376 = vpack.c.b16 %v286, %v284
    %v377 = vpack.c.b16 %v289, %v287
    %v378 = vpack.c.b16 %v290, %v288
    %v379 = vpack.c.b16 %v293, %v291
    %v380 = vpack.c.b16 %v294, %v292
    %v381 = vpack.c.b16 %v297, %v295
    %v382 = vpack.c.b16 %v298, %v296
    %v383 = vpack.c.b16 %v301, %v299
    %v384 = vpack.c.b16 %v302, %v300
    %v385 = vpack.c.b16 %v305, %v303
    %v386 = vpack.c.b16 %v306, %v304
    %v387 = vpack.c.b16 %v309, %v307
    %v388 = vpack.c.b16 %v310, %v308
    %v389 = vpack.c.b16 %v313, %v311
    %v390 = vpack.c.b16 %v314, %v312
    %v391 = vpack.c.b16 %v317, %v315
    %v392 = vpack.c.b16 %v318, %v316
    %v393 = vpack.c.b16 %v321, %v319
    %v394 = vpack.c.b16 %v322, %v320
    %v395 = vpack.c.b16 %v325, %v323
    %v396 = vpack.c.b16 %v326, %v324
    %v397 = vpack.c.b16 %v329, %v327
    %v398 = vpack.c.b16 %v330, %v328
    %v399 = vpack.c.b16 %v333, %v331
    %v400 = vpack.c.b16 %v334, %v332
    %v401 = vpack.c.b16 %v337, %v335
    %v402 = vpack.c.b16 %v338, %v336
    %v499 = vunpack.c.l.b16 %v108
    %v500 = vunpack.c.l.b16 %v109
    %v501 = vunpack.c.l.b16 %v110
    %v502 = vunpack.c.l.b16 %v111
    %v503 = vunpack.c.l.b16 %v112
    %v504 = vunpack.c.l.b16 %v113
    %v505 = vunpack.c.l.b16 %v114
    %v506 = vunpack.c.l.b16 %v115
    %v507 = vunpack.c.l.b16 %v116
    %v508 = vunpack.c.l.b16 %v117
    %v509 = vunpack.c.l.b16 %v118
    %v510 = vunpack.c.l.b16 %v119
    %v511 = vunpack.c.l.b16 %v120
    %v512 = vunpack.c.l.b16 %v121
    %v513 = vunpack.c.l.b16 %v122
    %v514 = vunpack.c.l.b16 %v123
    %v515 = vunpack.c.l.b16 %v124
    %v516 = vunpack.c.l.b16 %v125
    %v517 = vunpack.c.l.b16 %v126
    %v518 = vunpack.c.l.b16 %v127
    %v519 = vunpack.c.l.b16 %v128
    %v520 = vunpack.c.l.b16 %v129
    %v521 = vunpack.c.l.b16 %v130
    %v522 = vunpack.c.l.b16 %v131
    %v523 = vunpack.c.l.b16 %v132
    %v524 = vunpack.c.l.b16 %v133
    %v525 = vunpack.c.l.b16 %v134
    %v526 = vunpack.c.l.b16 %v135
    %v527 = vunpack.c.l.b16 %v136
    %v528 = vunpack.c.l.b16 %v137
    %v529 = vunpack.c.l.b16 %v138
    %v530 = vunpack.c.l.b16 %v139
    %v531 = vpack.c.b16 %v500, %v499
    %v532 = vpack.c.b16 %v502, %v501
    %v533 = vpack.c.b16 %v504, %v503
    %v534 = vpack.c.b16 %v506, %v505
    %v535 = vpack.c.b16 %v508, %v507
    %v536 = vpack.c.b16 %v510, %v509
    %v537 = vpack.c.b16 %v512, %v511
    %v538 = vpack.c.b16 %v514, %v513
    %v539 = vpack.c.b16 %v516, %v515
    %v540 = vpack.c.b16 %v518, %v517
    %v541 = vpack.c.b16 %v520, %v519
    %v542 = vpack.c.b16 %v522, %v521
    %v543 = vpack.c.b16 %v524, %v523
    %v544 = vpack.c.b16 %v526, %v525
    %v545 = vpack.c.b16 %v528, %v527
    %v546 = vpack.c.b16 %v530, %v529
    %563 = vmatprep.subr.bf16.mxu0 0
    %564 = vmatpush1.bf16.msra.mxu0 %v531
    %565 = vmatprep.subr.bf16.mxu0 0
    %566 = vmatpush1.bf16.msra.mxu0 %v532
    %567 = vmatprep.subr.bf16.mxu0 0
    %568 = vmatpush1.bf16.msra.mxu0 %v533
    %569 = vmatprep.subr.bf16.mxu0 0
    %570 = vmatpush1.bf16.msra.mxu0 %v534
    %571 = vmatprep.subr.bf16.mxu0 0
    %572 = vmatpush1.bf16.msra.mxu0 %v535
    %573 = vmatprep.subr.bf16.mxu0 0
    %574 = vmatpush1.bf16.msra.mxu0 %v536
    %575 = vmatprep.subr.bf16.mxu0 0
    %576 = vmatpush1.bf16.msra.mxu0 %v537
    %577 = vmatprep.subr.bf16.mxu0 0
    %578 = vmatpush1.bf16.msra.mxu0 %v538
    %579 = vmatprep.subr.bf16.mxu0 0
    %580 = vmatpush1.bf16.msra.mxu0 %v539
    %581 = vmatprep.subr.bf16.mxu0 0
    %582 = vmatpush1.bf16.msra.mxu0 %v540
    %583 = vmatprep.subr.bf16.mxu0 0
    %584 = vmatpush1.bf16.msra.mxu0 %v541
    %585 = vmatprep.subr.bf16.mxu0 0
    %586 = vmatpush1.bf16.msra.mxu0 %v542
    %587 = vmatprep.subr.bf16.mxu0 0
    %588 = vmatpush1.bf16.msra.mxu0 %v543
    %589 = vmatprep.subr.bf16.mxu0 0
    %590 = vmatpush1.bf16.msra.mxu0 %v544
    %591 = vmatprep.subr.bf16.mxu0 0
    %592 = vmatpush1.bf16.msra.mxu0 %v545
    %593 = vmatprep.subr.bf16.mxu0 0
    %594 = vmatpush1.bf16.msra.mxu0 %v546
    %595 = vmatprep.mubr.bf16.mxu0 %v340
    %596 = vmatmul.mubr.bf16.gmra.mrb[0].mxu0 %v339
    %v597 = vpop.f32.mrb[0].mxu0
    %v598 = vadd.f32 %v145, %v597
    %v599 = vpop.f32.mrb[0].mxu0
    %v600 = vpop.f32.mrb[0].mxu0
    %v601 = vadd.f32 %v145, %v600
    %v602 = vpop.f32.mrb[0].mxu0
    %603 = vmatprep.mubr.bf16.mxu0 %v342
    %604 = vmatmul.mubr.bf16.gmra.mrb[0].mxu0 %v341
    %v605 = vpop.f32.mrb[0].mxu0
    %v606 = vadd.f32 %v145, %v605
    %v607 = vpop.f32.mrb[0].mxu0
    %v608 = vpop.f32.mrb[0].mxu0
    %v609 = vadd.f32 %v145, %v608
    %v610 = vpop.f32.mrb[0].mxu0
    %611 = vmatprep.mubr.bf16.mxu0 %v344
    %612 = vmatmul.mubr.bf16.gmra.mrb[0].mxu0 %v343
    %v613 = vpop.f32.mrb[0].mxu0
    %v614 = vadd.f32 %v145, %v613
    %v615 = vpop.f32.mrb[0].mxu0
    %v616 = vpop.f32.mrb[0].mxu0
    %v617 = vadd.f32 %v145, %v616
    %v618 = vpop.f32.mrb[0].mxu0
    %619 = vmatprep.mubr.bf16.mxu0 %v346
    %620 = vmatmul.mubr.bf16.gmra.mrb[0].mxu0 %v345
    %v621 = vpop.f32.mrb[0].mxu0
    %v622 = vadd.f32 %v145, %v621
    %v623 = vpop.f32.mrb[0].mxu0
    %v624 = vpop.f32.mrb[0].mxu0
    %v625 = vadd.f32 %v145, %v624
    %v626 = vpop.f32.mrb[0].mxu0
    %627 = vmatprep.mubr.bf16.mxu0 %v348
    %628 = vmatmul.mubr.bf16.gmra.mrb[0].mxu0 %v347
    %v629 = vpop.f32.mrb[0].mxu0
    %v630 = vadd.f32 %v145, %v629
    %v631 = vpop.f32.mrb[0].mxu0
    %v632 = vpop.f32.mrb[0].mxu0
    %v633 = vadd.f32 %v145, %v632
    %v634 = vpop.f32.mrb[0].mxu0
    %635 = vmatprep.mubr.bf16.mxu0 %v350
    %636 = vmatmul.mubr.bf16.gmra.mrb[0].mxu0 %v349
    %v637 = vpop.f32.mrb[0].mxu0
    %v638 = vadd.f32 %v145, %v637
    %v639 = vpop.f32.mrb[0].mxu0
    %v640 = vpop.f32.mrb[0].mxu0
    %v641 = vadd.f32 %v145, %v640
    %v642 = vpop.f32.mrb[0].mxu0
    %643 = vmatprep.mubr.bf16.mxu0 %v352
    %644 = vmatmul.mubr.bf16.gmra.mrb[0].mxu0 %v351
    %v645 = vpop.f32.mrb[0].mxu0
    %v646 = vadd.f32 %v145, %v645
    %v647 = vpop.f32.mrb[0].mxu0
    %v648 = vpop.f32.mrb[0].mxu0
    %v649 = vadd.f32 %v145, %v648
    %v650 = vpop.f32.mrb[0].mxu0
    %651 = vmatprep.mubr.bf16.mxu0 %v354
    %652 = vmatmul.mubr.bf16.gmra.mrb[0].mxu0 %v353
    %v653 = vpop.f32.mrb[0].mxu0
    %v654 = vadd.f32 %v145, %v653
    %v655 = vpop.f32.mrb[0].mxu0
    %v656 = vpop.f32.mrb[0].mxu0
    %v657 = vadd.f32 %v145, %v656
    %v658 = vpop.f32.mrb[0].mxu0
    %659 = vmatprep.mubr.bf16.mxu0 %v356
    %660 = vmatmul.mubr.bf16.gmra.mrb[0].mxu0 %v355
    %v661 = vpop.f32.mrb[0].mxu0
    %v662 = vadd.f32 %v145, %v661
    %v663 = vpop.f32.mrb[0].mxu0
    %v664 = vpop.f32.mrb[0].mxu0
    %v665 = vadd.f32 %v145, %v664
    %v666 = vpop.f32.mrb[0].mxu0
    %667 = vmatprep.mubr.bf16.mxu0 %v358
    %668 = vmatmul.mubr.bf16.gmra.mrb[0].mxu0 %v357
    %v669 = vpop.f32.mrb[0].mxu0
    %v670 = vadd.f32 %v145, %v669
    %v671 = vpop.f32.mrb[0].mxu0
    %v672 = vpop.f32.mrb[0].mxu0
    %v673 = vadd.f32 %v145, %v672
    %v674 = vpop.f32.mrb[0].mxu0
    %675 = vmatprep.mubr.bf16.mxu0 %v360
    %676 = vmatmul.mubr.bf16.gmra.mrb[0].mxu0 %v359
    %v677 = vpop.f32.mrb[0].mxu0
    %v678 = vadd.f32 %v145, %v677
    %v679 = vpop.f32.mrb[0].mxu0
    %v680 = vpop.f32.mrb[0].mxu0
    %v681 = vadd.f32 %v145, %v680
    %v682 = vpop.f32.mrb[0].mxu0
    %683 = vmatprep.mubr.bf16.mxu0 %v362
    %684 = vmatmul.mubr.bf16.gmra.mrb[0].mxu0 %v361
    %v685 = vpop.f32.mrb[0].mxu0
    %v686 = vadd.f32 %v145, %v685
    %v687 = vpop.f32.mrb[0].mxu0
    %v688 = vpop.f32.mrb[0].mxu0
    %v689 = vadd.f32 %v145, %v688
    %v690 = vpop.f32.mrb[0].mxu0
    %691 = vmatprep.mubr.bf16.mxu0 %v364
    %692 = vmatmul.mubr.bf16.gmra.mrb[0].mxu0 %v363
    %v693 = vpop.f32.mrb[0].mxu0
    %v694 = vadd.f32 %v145, %v693
    %v695 = vpop.f32.mrb[0].mxu0
    %v696 = vpop.f32.mrb[0].mxu0
    %v697 = vadd.f32 %v145, %v696
    %v698 = vpop.f32.mrb[0].mxu0
    %699 = vmatprep.mubr.bf16.mxu0 %v366
    %700 = vmatmul.mubr.bf16.gmra.mrb[0].mxu0 %v365
    %v701 = vpop.f32.mrb[0].mxu0
    %v702 = vadd.f32 %v145, %v701
    %v703 = vpop.f32.mrb[0].mxu0
    %v704 = vpop.f32.mrb[0].mxu0
    %v705 = vadd.f32 %v145, %v704
    %v706 = vpop.f32.mrb[0].mxu0
    %707 = vmatprep.mubr.bf16.mxu0 %v368
    %708 = vmatmul.mubr.bf16.gmra.mrb[0].mxu0 %v367
    %v709 = vpop.f32.mrb[0].mxu0
    %v710 = vadd.f32 %v145, %v709
    %v711 = vpop.f32.mrb[0].mxu0
    %v712 = vpop.f32.mrb[0].mxu0
    %v713 = vadd.f32 %v145, %v712
    %v714 = vpop.f32.mrb[0].mxu0
    %715 = vmatprep.mubr.bf16.mxu0 %v370
    %716 = vmatmul.mubr.bf16.gmra.mrb[0].mxu0 %v369
    %v717 = vpop.f32.mrb[0].mxu0
    %v718 = vadd.f32 %v145, %v717
    %v719 = vpop.f32.mrb[0].mxu0
    %v720 = vpop.f32.mrb[0].mxu0
    %v721 = vadd.f32 %v145, %v720
    %v722 = vpop.f32.mrb[0].mxu0
    %723 = vmatprep.mubr.bf16.mxu0 %v372
    %724 = vmatmul.mubr.bf16.gmra.mrb[0].mxu0 %v371
    %v725 = vpop.f32.mrb[0].mxu0
    %v726 = vadd.f32 %v145, %v725
    %v727 = vpop.f32.mrb[0].mxu0
    %v728 = vpop.f32.mrb[0].mxu0
    %v729 = vadd.f32 %v145, %v728
    %v730 = vpop.f32.mrb[0].mxu0
    %731 = vmatprep.mubr.bf16.mxu0 %v374
    %732 = vmatmul.mubr.bf16.gmra.mrb[0].mxu0 %v373
    %v733 = vpop.f32.mrb[0].mxu0
    %v734 = vadd.f32 %v145, %v733
    %v735 = vpop.f32.mrb[0].mxu0
    %v736 = vpop.f32.mrb[0].mxu0
    %v737 = vadd.f32 %v145, %v736
    %v738 = vpop.f32.mrb[0].mxu0
    %739 = vmatprep.mubr.bf16.mxu0 %v376
    %740 = vmatmul.mubr.bf16.gmra.mrb[0].mxu0 %v375
    %v741 = vpop.f32.mrb[0].mxu0
    %v742 = vadd.f32 %v145, %v741
    %v743 = vpop.f32.mrb[0].mxu0
    %v744 = vpop.f32.mrb[0].mxu0
    %v745 = vadd.f32 %v145, %v744
    %v746 = vpop.f32.mrb[0].mxu0
    %747 = vmatprep.mubr.bf16.mxu0 %v378
    %748 = vmatmul.mubr.bf16.gmra.mrb[0].mxu0 %v377
    %v749 = vpop.f32.mrb[0].mxu0
    %v750 = vadd.f32 %v145, %v749
    %v751 = vpop.f32.mrb[0].mxu0
    %v752 = vpop.f32.mrb[0].mxu0
    %v753 = vadd.f32 %v145, %v752
    %v754 = vpop.f32.mrb[0].mxu0
    %755 = vmatprep.mubr.bf16.mxu0 %v380
    %756 = vmatmul.mubr.bf16.gmra.mrb[0].mxu0 %v379
    %v757 = vpop.f32.mrb[0].mxu0
    %v758 = vadd.f32 %v145, %v757
    %v759 = vpop.f32.mrb[0].mxu0
    %v760 = vpop.f32.mrb[0].mxu0
    %v761 = vadd.f32 %v145, %v760
    %v762 = vpop.f32.mrb[0].mxu0
    %763 = vmatprep.mubr.bf16.mxu0 %v382
    %764 = vmatmul.mubr.bf16.gmra.mrb[0].mxu0 %v381
    %v765 = vpop.f32.mrb[0].mxu0
    %v766 = vadd.f32 %v145, %v765
    %v767 = vpop.f32.mrb[0].mxu0
    %v768 = vpop.f32.mrb[0].mxu0
    %v769 = vadd.f32 %v145, %v768
    %v770 = vpop.f32.mrb[0].mxu0
    %771 = vmatprep.mubr.bf16.mxu0 %v384
    %772 = vmatmul.mubr.bf16.gmra.mrb[0].mxu0 %v383
    %v773 = vpop.f32.mrb[0].mxu0
    %v774 = vadd.f32 %v145, %v773
    %v775 = vpop.f32.mrb[0].mxu0
    %v776 = vpop.f32.mrb[0].mxu0
    %v777 = vadd.f32 %v145, %v776
    %v778 = vpop.f32.mrb[0].mxu0
    %779 = vmatprep.mubr.bf16.mxu0 %v386
    %780 = vmatmul.mubr.bf16.gmra.mrb[0].mxu0 %v385
    %v781 = vpop.f32.mrb[0].mxu0
    %v782 = vadd.f32 %v145, %v781
    %v783 = vpop.f32.mrb[0].mxu0
    %v784 = vpop.f32.mrb[0].mxu0
    %v785 = vadd.f32 %v145, %v784
    %v786 = vpop.f32.mrb[0].mxu0
    %787 = vmatprep.mubr.bf16.mxu0 %v388
    %788 = vmatmul.mubr.bf16.gmra.mrb[0].mxu0 %v387
    %v789 = vpop.f32.mrb[0].mxu0
    %v790 = vadd.f32 %v145, %v789
    %v791 = vpop.f32.mrb[0].mxu0
    %v792 = vpop.f32.mrb[0].mxu0
    %v793 = vadd.f32 %v145, %v792
    %v794 = vpop.f32.mrb[0].mxu0
    %795 = vmatprep.mubr.bf16.mxu0 %v390
    %796 = vmatmul.mubr.bf16.gmra.mrb[0].mxu0 %v389
    %v797 = vpop.f32.mrb[0].mxu0
    %v798 = vadd.f32 %v145, %v797
    %v799 = vpop.f32.mrb[0].mxu0
    %v800 = vpop.f32.mrb[0].mxu0
    %v801 = vadd.f32 %v145, %v800
    %v802 = vpop.f32.mrb[0].mxu0
    %803 = vmatprep.mubr.bf16.mxu0 %v392
    %804 = vmatmul.mubr.bf16.gmra.mrb[0].mxu0 %v391
    %v805 = vpop.f32.mrb[0].mxu0
    %v806 = vadd.f32 %v145, %v805
    %v807 = vpop.f32.mrb[0].mxu0
    %v808 = vpop.f32.mrb[0].mxu0
    %v809 = vadd.f32 %v145, %v808
    %v810 = vpop.f32.mrb[0].mxu0
    %811 = vmatprep.mubr.bf16.mxu0 %v394
    %812 = vmatmul.mubr.bf16.gmra.mrb[0].mxu0 %v393
    %v813 = vpop.f32.mrb[0].mxu0
    %v814 = vadd.f32 %v145, %v813
    %v815 = vpop.f32.mrb[0].mxu0
    %v816 = vpop.f32.mrb[0].mxu0
    %v817 = vadd.f32 %v145, %v816
    %v818 = vpop.f32.mrb[0].mxu0
    %819 = vmatprep.mubr.bf16.mxu0 %v396
    %820 = vmatmul.mubr.bf16.gmra.mrb[0].mxu0 %v395
    %v821 = vpop.f32.mrb[0].mxu0
    %v822 = vadd.f32 %v145, %v821
    %v823 = vpop.f32.mrb[0].mxu0
    %v824 = vpop.f32.mrb[0].mxu0
    %v825 = vadd.f32 %v145, %v824
    %v826 = vpop.f32.mrb[0].mxu0
    %827 = vmatprep.mubr.bf16.mxu0 %v398
    %828 = vmatmul.mubr.bf16.gmra.mrb[0].mxu0 %v397
    %v829 = vpop.f32.mrb[0].mxu0
    %v830 = vadd.f32 %v145, %v829
    %v831 = vpop.f32.mrb[0].mxu0
    %v832 = vpop.f32.mrb[0].mxu0
    %v833 = vadd.f32 %v145, %v832
    %v834 = vpop.f32.mrb[0].mxu0
    %835 = vmatprep.mubr.bf16.mxu0 %v400
    %836 = vmatmul.mubr.bf16.gmra.mrb[0].mxu0 %v399
    %v837 = vpop.f32.mrb[0].mxu0
    %v838 = vadd.f32 %v145, %v837
    %v839 = vpop.f32.mrb[0].mxu0
    %v840 = vpop.f32.mrb[0].mxu0
    %v841 = vadd.f32 %v145, %v840
    %v842 = vpop.f32.mrb[0].mxu0
    %843 = vmatprep.mubr.bf16.mxu0 %v402
    %844 = vmatmul.mubr.bf16.gmra.mrb[0].mxu0 %v401
    %v845 = vpop.f32.mrb[0].mxu0
    %v846 = vadd.f32 %v145, %v845
    %v847 = vpop.f32.mrb[0].mxu0
    %v848 = vpop.f32.mrb[0].mxu0
    %v849 = vadd.f32 %v145, %v848
    %v850 = vpop.f32.mrb[0].mxu0
    %851 = vdwg.mxu0
    %v852 = vmax.f32 %v598, 0.0
    %v853 = vmax.f32 %v601, 0.0
    %v854 = vmax.f32 %v606, 0.0
    %v855 = vmax.f32 %v609, 0.0
    %v856 = vmax.f32 %v614, 0.0
    %v857 = vmax.f32 %v617, 0.0
    %v858 = vmax.f32 %v622, 0.0
    %v859 = vmax.f32 %v625, 0.0
    %v860 = vmax.f32 %v630, 0.0
    %v861 = vmax.f32 %v633, 0.0
    %v862 = vmax.f32 %v638, 0.0
    %v863 = vmax.f32 %v641, 0.0
    %v864 = vmax.f32 %v646, 0.0
    %v865 = vmax.f32 %v649, 0.0
    %v866 = vmax.f32 %v654, 0.0
    %v867 = vmax.f32 %v657, 0.0
    %v868 = vmax.f32 %v662, 0.0
    %v869 = vmax.f32 %v665, 0.0
    %v870 = vmax.f32 %v670, 0.0
    %v871 = vmax.f32 %v673, 0.0
    %v872 = vmax.f32 %v678, 0.0
    %v873 = vmax.f32 %v681, 0.0
    %v874 = vmax.f32 %v686, 0.0
    %v875 = vmax.f32 %v689, 0.0
    %v876 = vmax.f32 %v694, 0.0
    %v877 = vmax.f32 %v697, 0.0
    %v878 = vmax.f32 %v702, 0.0
    %v879 = vmax.f32 %v705, 0.0
    %v880 = vmax.f32 %v710, 0.0
    %v881 = vmax.f32 %v713, 0.0
    %v882 = vmax.f32 %v718, 0.0
    %v883 = vmax.f32 %v721, 0.0
    %v884 = vmax.f32 %v726, 0.0
    %v885 = vmax.f32 %v729, 0.0
    %v886 = vmax.f32 %v734, 0.0
    %v887 = vmax.f32 %v737, 0.0
    %v888 = vmax.f32 %v742, 0.0
    %v889 = vmax.f32 %v745, 0.0
    %v890 = vmax.f32 %v750, 0.0
    %v891 = vmax.f32 %v753, 0.0
    %v892 = vmax.f32 %v758, 0.0
    %v893 = vmax.f32 %v761, 0.0
    %v894 = vmax.f32 %v766, 0.0
    %v895 = vmax.f32 %v769, 0.0
    %v896 = vmax.f32 %v774, 0.0
    %v897 = vmax.f32 %v777, 0.0
    %v898 = vmax.f32 %v782, 0.0
    %v899 = vmax.f32 %v785, 0.0
    %v900 = vmax.f32 %v790, 0.0
    %v901 = vmax.f32 %v793, 0.0
    %v902 = vmax.f32 %v798, 0.0
    %v903 = vmax.f32 %v801, 0.0
    %v904 = vmax.f32 %v806, 0.0
    %v905 = vmax.f32 %v809, 0.0
    %v906 = vmax.f32 %v814, 0.0
    %v907 = vmax.f32 %v817, 0.0
    %v908 = vmax.f32 %v822, 0.0
    %v909 = vmax.f32 %v825, 0.0
    %v910 = vmax.f32 %v830, 0.0
    %v911 = vmax.f32 %v833, 0.0
    %v912 = vmax.f32 %v838, 0.0
    %v913 = vmax.f32 %v841, 0.0
    %v914 = vmax.f32 %v846, 0.0
    %v915 = vmax.f32 %v849, 0.0
    %916 = vst [vmem:[#allocation7] sm:$0xff] %v852
    %917 = vst [vmem:[#allocation7 + $0x8] sm:$0xff] %v853
    %918 = vst [vmem:[#allocation7 + $0x10] sm:$0xff] %v854
    %919 = vst [vmem:[#allocation7 + $0x18] sm:$0xff] %v855
    %920 = vst [vmem:[#allocation7 + $0x20] sm:$0xff] %v856
    %921 = vst [vmem:[#allocation7 + $0x28] sm:$0xff] %v857
    %922 = vst [vmem:[#allocation7 + $0x30] sm:$0xff] %v858
    %923 = vst [vmem:[#allocation7 + $0x38] sm:$0xff] %v859
    %924 = vst [vmem:[#allocation7 + $0x40] sm:$0xff] %v860
    %925 = vst [vmem:[#allocation7 + $0x48] sm:$0xff] %v861
    %926 = vst [vmem:[#allocation7 + $0x50] sm:$0xff] %v862
    %927 = vst [vmem:[#allocation7 + $0x58] sm:$0xff] %v863
    %928 = vst [vmem:[#allocation7 + $0x60] sm:$0xff] %v864
    %929 = vst [vmem:[#allocation7 + $0x68] sm:$0xff] %v865
    %930 = vst [vmem:[#allocation7 + $0x70] sm:$0xff] %v866
    %931 = vst [vmem:[#allocation7 + $0x78] sm:$0xff] %v867
    %932 = vst [vmem:[#allocation7 + $0x80] sm:$0xff] %v868
    %933 = vst [vmem:[#allocation7 + $0x88] sm:$0xff] %v869
    %934 = vst [vmem:[#allocation7 + $0x90] sm:$0xff] %v870
    %935 = vst [vmem:[#allocation7 + $0x98] sm:$0xff] %v871
    %936 = vst [vmem:[#allocation7 + $0xa0] sm:$0xff] %v872
    %937 = vst [vmem:[#allocation7 + $0xa8] sm:$0xff] %v873
    %938 = vst [vmem:[#allocation7 + $0xb0] sm:$0xff] %v874
    %939 = vst [vmem:[#allocation7 + $0xb8] sm:$0xff] %v875
    %940 = vst [vmem:[#allocation7 + $0xc0] sm:$0xff] %v876
    %941 = vst [vmem:[#allocation7 + $0xc8] sm:$0xff] %v877
    %942 = vst [vmem:[#allocation7 + $0xd0] sm:$0xff] %v878
    %943 = vst [vmem:[#allocation7 + $0xd8] sm:$0xff] %v879
    %944 = vst [vmem:[#allocation7 + $0xe0] sm:$0xff] %v880
    %945 = vst [vmem:[#allocation7 + $0xe8] sm:$0xff] %v881
    %946 = vst [vmem:[#allocation7 + $0xf0] sm:$0xff] %v882
    %947 = vst [vmem:[#allocation7 + $0xf8] sm:$0xff] %v883
    %948 = vst [vmem:[#allocation7 + $0x100] sm:$0xff] %v884
    %949 = vst [vmem:[#allocation7 + $0x108] sm:$0xff] %v885
    %950 = vst [vmem:[#allocation7 + $0x110] sm:$0xff] %v886
    %951 = vst [vmem:[#allocation7 + $0x118] sm:$0xff] %v887
    %952 = vst [vmem:[#allocation7 + $0x120] sm:$0xff] %v888
    %953 = vst [vmem:[#allocation7 + $0x128] sm:$0xff] %v889
    %954 = vst [vmem:[#allocation7 + $0x130] sm:$0xff] %v890
    %955 = vst [vmem:[#allocation7 + $0x138] sm:$0xff] %v891
    %956 = vst [vmem:[#allocation7 + $0x140] sm:$0xff] %v892
    %957 = vst [vmem:[#allocation7 + $0x148] sm:$0xff] %v893
    %958 = vst [vmem:[#allocation7 + $0x150] sm:$0xff] %v894
    %959 = vst [vmem:[#allocation7 + $0x158] sm:$0xff] %v895
    %960 = vst [vmem:[#allocation7 + $0x160] sm:$0xff] %v896
    %961 = vst [vmem:[#allocation7 + $0x168] sm:$0xff] %v897
    %962 = vst [vmem:[#allocation7 + $0x170] sm:$0xff] %v898
    %963 = vst [vmem:[#allocation7 + $0x178] sm:$0xff] %v899
    %964 = vst [vmem:[#allocation7 + $0x180] sm:$0xff] %v900
    %965 = vst [vmem:[#allocation7 + $0x188] sm:$0xff] %v901
    %966 = vst [vmem:[#allocation7 + $0x190] sm:$0xff] %v902
    %967 = vst [vmem:[#allocation7 + $0x198] sm:$0xff] %v903
    %968 = vst [vmem:[#allocation7 + $0x1a0] sm:$0xff] %v904
    %969 = vst [vmem:[#allocation7 + $0x1a8] sm:$0xff] %v905
    %970 = vst [vmem:[#allocation7 + $0x1b0] sm:$0xff] %v906
    %971 = vst [vmem:[#allocation7 + $0x1b8] sm:$0xff] %v907
    %972 = vst [vmem:[#allocation7 + $0x1c0] sm:$0xff] %v908
    %973 = vst [vmem:[#allocation7 + $0x1c8] sm:$0xff] %v909
    %974 = vst [vmem:[#allocation7 + $0x1d0] sm:$0xff] %v910
    %975 = vst [vmem:[#allocation7 + $0x1d8] sm:$0xff] %v911
    %976 = vst [vmem:[#allocation7 + $0x1e0] sm:$0xff] %v912
    %977 = vst [vmem:[#allocation7 + $0x1e8] sm:$0xff] %v913
    %978 = vst [vmem:[#allocation7 + $0x1f0] sm:$0xff] %v914
    %979 = vst [vmem:[#allocation7 + $0x1f8] sm:$0xff] %v915
    // Predicated region
    $region22: #{tpu_custom_call.1} parent=1 // pred_check
      _
    $region23: #{tpu_custom_call.1} parent=1 // pred_check_branch
      %981 = sbr.rel (0) target = $region25
    $region24: #{tpu_custom_call.1} parent=1 // pred_region
      %s983 = ssub.s32 8192, 8192
      %984 = vsyncadd [#allocation4], %s983
      %s985 = sshll.u32 [#allocation7], 4
      %s986 = int_to_ptr.vmem [resolvable:$true] %s985
      %991 = dma.vmem_to_hbm [thread:$0]  %s986, 8192, %s3, [#allocation4], 128, 128, 8
    $region25: #{tpu_custom_call.1} parent=1 // pred_fallthru
      _
    // Predicated region
    $region26: #{tpu_custom_call.1} parent=1 // pred_check
      _
    $region27: #{tpu_custom_call.1} parent=1 // pred_check_branch
      %993 = sbr.rel (0) target = $region29
    $region28: #{tpu_custom_call.1} parent=1 // pred_region
      %994 = dma.done [#allocation4], 8192
    $region29: #{tpu_custom_call.1} parent=1 // pred_fallthru
      _
    %995 = vsyncpa [#allocation3], 1
    %996 = vsyncpa [#allocation6], 1
    %997 = vsyncpa [#allocation4], 1

</llo_original>
